<compile_context>
chip_gen: v5e
topology: v5e:2x2
jax: 0.10.0
libtpu: 0.0.40
codegen_flags: <defaults>
</compile_context>

<pallas_src>
import jax
import jax.numpy as jnp
from jax import lax
from jax.experimental import pallas as pl
from jax.experimental.pallas import tpu as pltpu


def _round_up(x, m):
    return ((x + m - 1) // m) * m


# ----------------------------------------------------------------------------
# Kernel 1: node projection  P = [h @ W_s^T + b ; h @ W_d^T]   (runs once/call)
# ----------------------------------------------------------------------------
def _node_projection_kernel(h_ref, ws_ref, wd_ref, b_ref, p_ref):
    # h_ref:  (N_pad, D)      node features (zero-padded on the node axis)
    # ws/wd:  (D, C_pad)      pre-transposed halves of the linear weight
    # b_ref:  (1, C_pad)      bias (zero-padded)
    # p_ref:  (2*N_pad, C_pad) stacked node projections, bias folded into src half
    h = h_ref[...]
    p_src = jnp.dot(h, ws_ref[...], preferred_element_type=jnp.float32) + b_ref[...]
    p_dst = jnp.dot(h, wd_ref[...], preferred_element_type=jnp.float32)
    p_ref[...] = jnp.concatenate([p_src, p_dst], axis=0).astype(p_ref.dtype)


# ----------------------------------------------------------------------------
# Kernel 2: per-edge gather-matmul  score = onehot(src, dst) @ P
# ----------------------------------------------------------------------------
def _edge_score_kernel(idx_ref, p_ref, out_ref):
    # idx_ref: (TILE_E, 2) int32, columns = [src, N_pad + dst]  (disjoint ranges)
    # p_ref:   (2*N_pad, C_pad)  node projections, VMEM-resident across the grid
    # out_ref: (TILE_E, C_pad)   edge scores
    idx = idx_ref[...]
    two_n = p_ref.shape[0]
    tile_e = idx.shape[0]

    iota = lax.broadcasted_iota(jnp.int32, (tile_e, two_n), 1)
    # The src half hits [0, N_pad) and the dst half [N_pad, 2*N_pad), so the
    # sum below is an exact {0,1} two-hot row selector.
    onehot = ((idx[:, 0:1] == iota).astype(p_ref.dtype)
              + (idx[:, 1:2] == iota).astype(p_ref.dtype))

    # Single MXU contraction per tile: (TILE_E, 2*N_pad) @ (2*N_pad, C_pad).
    # For very large N, replace this one-hot gather with a scalar-prefetch /
    # manual-DMA row gather of P to remove the O(E*N) compare + K=2N cost.
    y = jnp.dot(onehot, p_ref[...], preferred_element_type=jnp.float32)
    out_ref[...] = y.astype(out_ref.dtype)


# ----------------------------------------------------------------------------
# One-time parameter preparation (NOT per call)
# ----------------------------------------------------------------------------
def prepare_params(weight, bias):
    """weight: (C, 2*D) nn.Linear weight; bias: (C,).
    Returns (w_src, w_dst, b2d) with shapes (D, C_pad), (D, C_pad), (1, C_pad),
    where C_pad = round_up(C, 128) for lane-dense stores."""
    c, two_d = weight.shape
    d = two_d // 2
    c_pad = _round_up(c, 128)
    w_src = jnp.zeros((d, c_pad), weight.dtype).at[:, :c].set(weight[:, :d].T)
    w_dst = jnp.zeros((d, c_pad), weight.dtype).at[:, :c].set(weight[:, d:].T)
    b2d = jnp.zeros((1, c_pad), bias.dtype).at[0, :c].set(bias)
    return w_src, w_dst, b2d


# ----------------------------------------------------------------------------
# Forward wrapper
# ----------------------------------------------------------------------------
def hetero_mlp_predictor(src, dst, h, w_src, w_dst, b2d, n_classes,
                         *, tile_e=1024, p_dtype=None):
    """src, dst: (E,) int edge endpoints; h: (N, D) node features.
    w_src/w_dst/b2d: outputs of prepare_params.  Returns (E, n_classes).
    p_dtype: dtype for the precomputed projections P (set jnp.bfloat16 to use
    the bf16 MXU path on v5e/v6e when logits tolerate it)."""
    e = src.shape[0]
    n, d = h.shape
    c_pad = w_src.shape[1]
    p_dtype = h.dtype if p_dtype is None else p_dtype

    # --- 1) node projections P (tiny, runs once per forward call) -----------
    n_pad = _round_up(n, 8)  # sublane-aligned offset for the dst half of P
    h_pad = h if n_pad == n else jnp.zeros((n_pad, d), h.dtype).at[:n].set(h)
    p = pl.pallas_call(
        _node_projection_kernel,
        out_shape=jax.ShapeDtypeStruct((2 * n_pad, c_pad), p_dtype),
    )(h_pad, w_src, w_dst, b2d)

    # --- 2) edge tiling ------------------------------------------------------
    e8 = _round_up(max(e, 1), 8)
    tile_e = min(tile_e, e8)
    # Prefer >= 2 grid steps so both v7x TensorCores get work.
    if e8 > 8 and pl.cdiv(e8, tile_e) < 2:
        tile_e = _round_up(pl.cdiv(e8, 2), 8)
    e_pad = _round_up(e8, tile_e)
    grid = (e_pad // tile_e,)

    # Merged edge-index array: column 0 = src, column 1 = dst + N_pad.
    # Padding rows point at valid, non-overlapping rows of P and are sliced
    # off below, so their values never matter.
    idx = jnp.full((e_pad, 2), n_pad, jnp.int32)
    idx = idx.at[:e_pad, 0].set(0)
    idx = idx.at[:e, 0].set(src.astype(jnp.int32))
    idx = idx.at[:e, 1].set(dst.astype(jnp.int32) + n_pad)

    # --- 3) explicit VMEM budget (v7x has 64 MiB physical / 32 MiB scoped) --
    p_bytes = jnp.dtype(p_dtype).itemsize
    o_bytes = jnp.dtype(h.dtype).itemsize
    vmem_needed = (2 * tile_e * 2 * 4                 # idx tile, double-buffered
                   + 2 * tile_e * c_pad * o_bytes     # out tile, double-buffered
                   + 2 * 2 * n_pad * c_pad * p_bytes  # resident P (x2 buffers)
                   + 2 * tile_e * 2 * n_pad * 4       # one-hot intermediate
                   + (4 << 20))                       # slack
    vmem_limit = int(min(max(vmem_needed, 32 << 20), 64 << 20))

    out = pl.pallas_call(
        _edge_score_kernel,
        out_shape=jax.ShapeDtypeStruct((e_pad, c_pad), h.dtype),
        grid=grid,
        in_specs=[
            pl.BlockSpec((tile_e, 2), lambda i: (i, 0)),        # edge indices
            pl.BlockSpec((2 * n_pad, c_pad), lambda i: (0, 0)),  # P, resident
        ],
        out_specs=pl.BlockSpec((tile_e, c_pad), lambda i: (i, 0)),
        compiler_params=pltpu.CompilerParams(
            dimension_semantics=("parallel",),
            vmem_limit_bytes=vmem_limit),
    )(idx, p)

    return out[:e, :n_classes]


if __name__ == "__main__":
    key = jax.random.PRNGKey(0)
    n_nodes, in_dims, n_classes, n_edges = 16, 32, 4, 40

    k_h, k_w, k_b, k_s, k_d = jax.random.split(key, 5)
    h = jax.random.normal(k_h, (n_nodes, in_dims), jnp.float32)
    bound = 1.0 / jnp.sqrt(2.0 * in_dims)
    weight = jax.random.uniform(k_w, (n_classes, 2 * in_dims), jnp.float32,
                                minval=-bound, maxval=bound)
    bias = jax.random.uniform(k_b, (n_classes,), jnp.float32,
                              minval=-bound, maxval=bound)
    src = jax.random.randint(k_s, (n_edges,), 0, n_nodes, jnp.int32)
    dst = jax.random.randint(k_d, (n_edges,), 0, n_nodes, jnp.int32)

    # TODO(synk): dgl graph plumbing (local_scope / apply_edges) has no Pallas
    # equivalent; the graph is represented directly by the src/dst index arrays.
    w_src, w_dst, b2d = prepare_params(weight, bias)
    score = hetero_mlp_predictor(src, dst, h, w_src, w_dst, b2d, n_classes)
    jax.block_until_ready(score)

    # Reference check against plain JAX (mirrors the PyTorch forward).
    x = jnp.concatenate([h[src], h[dst]], axis=1)
    score_ref = x @ weight.T + bias
    assert score.shape == (n_edges, n_classes)
    assert jnp.allclose(score, score_ref, atol=1e-4, rtol=1e-4), "score mismatch"

    print("KERNEL_OK")
</pallas_src>

<mosaic_0001>
module attributes {stable_mosaic.version = 11 : i64} {
  func.func @_node_projection_kernel(%arg0: memref<16x32xf32, #tpu.memory_space<vmem>>, %arg1: memref<32x128xf32, #tpu.memory_space<vmem>>, %arg2: memref<32x128xf32, #tpu.memory_space<vmem>>, %arg3: memref<1x128xf32, #tpu.memory_space<vmem>>, %arg4: memref<32x128xf32, #tpu.memory_space<vmem>>) attributes {dimension_semantics = [], scalar_prefetch = 0 : i64, scratch_operands = 0 : i64, tpu.core_type = #tpu.core_type<tc>} {
    %c0 = arith.constant 0 : index
    %c0_0 = arith.constant 0 : index
    %0 = vector.load %arg0[%c0, %c0_0] : memref<16x32xf32, #tpu.memory_space<vmem>>, vector<16x32xf32>
    %c0_1 = arith.constant 0 : index
    %c0_2 = arith.constant 0 : index
    %1 = vector.load %arg1[%c0_1, %c0_2] : memref<32x128xf32, #tpu.memory_space<vmem>>, vector<32x128xf32>
    %cst = arith.constant dense<0.000000e+00> : vector<16x128xf32>
    %2 = tpu.matmul %0, %1, %cst {dimension_numbers = #tpu.dot_dimension_numbers<[1], [0], [0], [1], [0, 0, 1, 1], [], []>} : vector<16x32xf32>, vector<32x128xf32>, vector<16x128xf32> -> vector<16x128xf32>
    %c0_3 = arith.constant 0 : index
    %c0_4 = arith.constant 0 : index
    %3 = vector.load %arg3[%c0_3, %c0_4] : memref<1x128xf32, #tpu.memory_space<vmem>>, vector<1x128xf32>
    %4 = vector.broadcast %3 : vector<1x128xf32> to vector<16x128xf32>
    %5 = arith.addf %2, %4 : vector<16x128xf32>
    %c0_5 = arith.constant 0 : index
    %c0_6 = arith.constant 0 : index
    %6 = vector.load %arg2[%c0_5, %c0_6] : memref<32x128xf32, #tpu.memory_space<vmem>>, vector<32x128xf32>
    %cst_7 = arith.constant dense<0.000000e+00> : vector<16x128xf32>
    %7 = tpu.matmul %0, %6, %cst_7 {dimension_numbers = #tpu.dot_dimension_numbers<[1], [0], [0], [1], [0, 0, 1, 1], [], []>} : vector<16x32xf32>, vector<32x128xf32>, vector<16x128xf32> -> vector<16x128xf32>
    %8 = tpu.concatenate %5, %7 in 0 : vector<16x128xf32>, vector<16x128xf32> -> vector<32x128xf32>
    %c0_8 = arith.constant 0 : index
    %c0_9 = arith.constant 0 : index
    %9 = vector.load %arg4[%c0_8, %c0_9] : memref<32x128xf32, #tpu.memory_space<vmem>>, vector<32x128xf32>
    tpu.vector_store %arg4[%c0_8, %c0_9], %8 {strides = array<i32>} : memref<32x128xf32, #tpu.memory_space<vmem>>, vector<32x128xf32>,
    return
  }
}

</mosaic_0001>

<llo_original>
// kernel: tpu_custom_call.1
$region0: #{tpu_custom_call.1}
  #allocation0 [shape = 'u32[]', space=smem, size = 0x4, offset = 0x4, fixed_abs, tag = 'smem constant byte address 0x4 - core index']
  #allocation1 [shape = 'u32[72,128]{1,0:T(1,128)}', space=vmem, size = 0x9000, scoped, tag = 'internal scratch']
  %s0 = inlined_call_operand.hbm [shape: f32[16,32], index: 0, kind: input, shape index: {}]
  %s1 = inlined_call_operand.hbm [shape: f32[32,128], index: 1, kind: input, shape index: {}]
  %s2 = inlined_call_operand.hbm [shape: f32[32,128], index: 2, kind: input, shape index: {}]
  %s3 = inlined_call_operand.vmem [shape: f32[1,128], index: 3, kind: input, shape index: {}]
  %s4 = inlined_call_operand.hbm [shape: f32[32,128], index: 4, kind: output, shape index: {}]
  %s5 = sld [smem:[#allocation0]]
  $region38: #{tpu_custom_call.1} parent=0
    _
  %s7 = ssub.s32 1, %s5
  %s8 = scalar_select 0, %s7, %s5
  $region1: #{tpu_custom_call.1} parent=0
    #allocation2 [shape = 'u8[8192]{0}', space=vmem, size = 0x2000, scoped, tag = 'input window, operand 0, single buffered']
    #allocation3 [shape = 's32[1]{0}', space=sflag, size = 0x4, scoped, tag = 'scoped memory for tpu_custom_call.1']
    #allocation4 [shape = 's32[1]{0}', space=sflag, size = 0x4, scoped, tag = 'scoped memory for tpu_custom_call.1']
    #allocation5 [shape = 'u8[16384]{0}', space=vmem, size = 0x4000, scoped, tag = 'input window, operand 1, single buffered']
    #allocation6 [shape = 's32[1]{0}', space=sflag, size = 0x4, scoped, tag = 'scoped memory for tpu_custom_call.1']
    #allocation7 [shape = 'u8[16384]{0}', space=vmem, size = 0x4000, scoped, tag = 'input window, operand 2, single buffered']
    #allocation8 [shape = 'u8[16384]{0}', space=vmem, size = 0x4000, scoped, tag = 'output window, operand 0, single buffered']
    %9 = vsyncpa [#allocation3], 0
    %10 = vsyncpa [#allocation6], 0
    %11 = vsyncpa [#allocation4], 0
    // Predicated region
    $region2: #{tpu_custom_call.1} parent=1 // pred_check
      _
    $region3: #{tpu_custom_call.1} parent=1 // pred_check_branch
      %13 = sbr.rel (0) target = $region5
    $region4: #{tpu_custom_call.1} parent=1 // pred_region
      %15 = vsyncadd [#allocation3], 0
      %s16 = sshll.u32 %s0, 4
      %s17 = int_to_ptr.hbm [resolvable:$true] %s16
      %s18 = sshll.u32 [#allocation2], 4
      %s19 = int_to_ptr.vmem [resolvable:$true] %s18
      %24 = dma.hbm_to_vmem [thread:$0]  %s17, 256, %s19, [#allocation3], 128, 128, 8
    $region5: #{tpu_custom_call.1} parent=1 // pred_fallthru
      _
    // Predicated region
    $region6: #{tpu_custom_call.1} parent=1 // pred_check
      _
    $region7: #{tpu_custom_call.1} parent=1 // pred_check_branch
      %26 = sbr.rel (0) target = $region9
    $region8: #{tpu_custom_call.1} parent=1 // pred_region
      %28 = vsyncadd [#allocation6], 0
      %s29 = sshll.u32 %s1, 4
      %s30 = int_to_ptr.hbm [resolvable:$true] %s29
      %s31 = sshll.u32 [#allocation5], 4
      %s32 = int_to_ptr.vmem [resolvable:$true] %s31
      %37 = dma.hbm_to_vmem [thread:$0]  %s30, 512, %s32, [#allocation6], 128, 128, 8
    $region9: #{tpu_custom_call.1} parent=1 // pred_fallthru
      _
    // Predicated region
    $region10: #{tpu_custom_call.1} parent=1 // pred_check
      _
    $region11: #{tpu_custom_call.1} parent=1 // pred_check_branch
      %39 = sbr.rel (0) target = $region13
    $region12: #{tpu_custom_call.1} parent=1 // pred_region
      %41 = vsyncadd [#allocation6], 0
      %s42 = sshll.u32 %s2, 4
      %s43 = int_to_ptr.hbm [resolvable:$true] %s42
      %s44 = sshll.u32 [#allocation7], 4
      %s45 = int_to_ptr.vmem [resolvable:$true] %s44
      %50 = dma.hbm_to_vmem [thread:$0]  %s43, 512, %s45, [#allocation6], 128, 128, 8
    $region13: #{tpu_custom_call.1} parent=1 // pred_fallthru
      _
    // Predicated region
    $region14: #{tpu_custom_call.1} parent=1 // pred_check
      _
    $region15: #{tpu_custom_call.1} parent=1 // pred_check_branch
      %52 = sbr.rel (0) target = $region17
    $region16: #{tpu_custom_call.1} parent=1 // pred_region
      _
    $region17: #{tpu_custom_call.1} parent=1 // pred_fallthru
      _
    // Predicated region
    $region18: #{tpu_custom_call.1} parent=1 // pred_check
      _
    $region19: #{tpu_custom_call.1} parent=1 // pred_check_branch
      %54 = sbr.rel (0) target = $region21
    $region20: #{tpu_custom_call.1} parent=1 // pred_region
      %56 = dma.done [#allocation3], 256
    $region21: #{tpu_custom_call.1} parent=1 // pred_fallthru
      _
    // Predicated region
    $region22: #{tpu_custom_call.1} parent=1 // pred_check
      _
    $region23: #{tpu_custom_call.1} parent=1 // pred_check_branch
      %58 = sbr.rel (0) target = $region25
    $region24: #{tpu_custom_call.1} parent=1 // pred_region
      %60 = dma.done [#allocation6], 512
    $region25: #{tpu_custom_call.1} parent=1 // pred_fallthru
      _
    // Predicated region
    $region26: #{tpu_custom_call.1} parent=1 // pred_check
      _
    $region27: #{tpu_custom_call.1} parent=1 // pred_check_branch
      %62 = sbr.rel (0) target = $region29
    $region28: #{tpu_custom_call.1} parent=1 // pred_region
      %64 = dma.done [#allocation6], 512
    $region29: #{tpu_custom_call.1} parent=1 // pred_fallthru
      _
    %v65 = vld [vmem:[#allocation2] sm:$0xff]
    %v66 = vld [vmem:[#allocation2 + $0x8] sm:$0xff]
    %v67 = vld [vmem:[#allocation5] sm:$0xff]
    %v68 = vld [vmem:[#allocation5 + $0x8] sm:$0xff]
    %v69 = vld [vmem:[#allocation5 + $0x10] sm:$0xff]
    %v70 = vld [vmem:[#allocation5 + $0x18] sm:$0xff]
    %v71 = vld [vmem:[%s3] sm:$0x1]
    %v73 = vperm.slane %v71, 0
    %vm75 = vcmask 261120
    %v77 = vsel %vm75, %v65, 0
    %v80 = vsel %vm75, %v66, 0
    %82 = vmatpush.msra.mxu0 0.0
    %83 = vmatpush.msra.mxu0 0.0
    %84 = vmatpush.msra.mxu0 0.0
    %85 = vmatpush.msra.mxu0 0.0
    %86 = vmatpush.msra.mxu0 0.0
    %87 = vmatpush.msra.mxu0 0.0
    %88 = vmatpush.msra.mxu0 0.0
    %89 = vmatpush.msra.mxu0 0.0
    %90 = vmatpush.msra.mxu0 0.0
    %91 = vmatpush.msra.mxu0 0.0
    %92 = vmatpush.msra.mxu0 0.0
    %93 = vmatpush.msra.mxu0 0.0
    %94 = vmatpush.msra.mxu0 %v70
    %95 = vmatpush.msra.mxu0 %v69
    %96 = vmatpush.msra.mxu0 %v68
    %97 = vmatpush.msra.mxu0 %v67
    %98 = vmatmul.f32.gmra.mxu0 %v77
    %v99 = vpop.f32.mrf.mxu0
    %v100 = vadd.f32 %v73, %v99
    %101 = vmatmul.f32.gmra.mxu0 %v80
    %v102 = vpop.f32.mrf.mxu0
    %v103 = vadd.f32 %v73, %v102
    %104 = vdwg.mxu0
    %v105 = vld [vmem:[#allocation7] sm:$0xff]
    %v106 = vld [vmem:[#allocation7 + $0x8] sm:$0xff]
    %v107 = vld [vmem:[#allocation7 + $0x10] sm:$0xff]
    %v108 = vld [vmem:[#allocation7 + $0x18] sm:$0xff]
    %109 = vmatpush.msra.mxu0 0.0
    %110 = vmatpush.msra.mxu0 0.0
    %111 = vmatpush.msra.mxu0 0.0
    %112 = vmatpush.msra.mxu0 0.0
    %113 = vmatpush.msra.mxu0 0.0
    %114 = vmatpush.msra.mxu0 0.0
    %115 = vmatpush.msra.mxu0 0.0
    %116 = vmatpush.msra.mxu0 0.0
    %117 = vmatpush.msra.mxu0 0.0
    %118 = vmatpush.msra.mxu0 0.0
    %119 = vmatpush.msra.mxu0 0.0
    %120 = vmatpush.msra.mxu0 0.0
    %121 = vmatpush.msra.mxu0 %v108
    %122 = vmatpush.msra.mxu0 %v107
    %123 = vmatpush.msra.mxu0 %v106
    %124 = vmatpush.msra.mxu0 %v105
    %125 = vmatmul.f32.gmra.mxu0 %v77
    %v126 = vpop.f32.mrf.mxu0
    %v127 = vadd.f32 0.0, %v126
    %128 = vmatmul.f32.gmra.mxu0 %v80
    %v129 = vpop.f32.mrf.mxu0
    %v130 = vadd.f32 0.0, %v129
    %131 = vdwg.mxu0
    %132 = vst [vmem:[#allocation8] sm:$0xff] %v100
    %133 = vst [vmem:[#allocation8 + $0x8] sm:$0xff] %v103
    %134 = vst [vmem:[#allocation8 + $0x10] sm:$0xff] %v127
    %135 = vst [vmem:[#allocation8 + $0x18] sm:$0xff] %v130
    // Predicated region
    $region30: #{tpu_custom_call.1} parent=1 // pred_check
      _
    $region31: #{tpu_custom_call.1} parent=1 // pred_check_branch
      %137 = sbr.rel (0) target = $region33
    $region32: #{tpu_custom_call.1} parent=1 // pred_region
      %139 = vsyncadd [#allocation4], 0
      %s140 = sshll.u32 [#allocation8], 4
      %s141 = int_to_ptr.vmem [resolvable:$true] %s140
      %s142 = sshll.u32 %s4, 4
      %s143 = int_to_ptr.hbm [resolvable:$true] %s142
      %148 = dma.vmem_to_hbm [thread:$0]  %s141, 512, %s143, [#allocation4], 128, 128, 8
    $region33: #{tpu_custom_call.1} parent=1 // pred_fallthru
      _
    // Predicated region
    $region34: #{tpu_custom_call.1} parent=1 // pred_check
      _
    $region35: #{tpu_custom_call.1} parent=1 // pred_check_branch
      %150 = sbr.rel (0) target = $region37
    $region36: #{tpu_custom_call.1} parent=1 // pred_region
      %152 = dma.done [#allocation4], 512
    $region37: #{tpu_custom_call.1} parent=1 // pred_fallthru
      _
    %153 = vsyncpa [#allocation3], 1
    %154 = vsyncpa [#allocation6], 1
    %155 = vsyncpa [#allocation4], 1

</llo_original>
